<compile_context>
chip_gen: v7x
topology: tpu7x:2x2x1
jax: 0.10.0
libtpu: 0.0.40
codegen_flags: <defaults>
</compile_context>

<pallas_src>
import jax
import jax.numpy as jnp
from jax import lax
from jax.experimental import pallas as pl
from jax.experimental.pallas import tpu as pltpu


# ----------------------------------------------------------------------------
# Pallas kernels
# ----------------------------------------------------------------------------
def _whitened_fock_kernel(shr_ref, shc_ref, h0_ref, s_ref, linv_ref, linvt_ref,
                          a_ref):
    """A = L^{-1} (H0 + 0.5 * S * (shift_i + shift_j)) L^{-T}.

    shr : (bb, NO, 1)   shift_orb as a column  (row-index contribution)
    shc : (bb, 1, NO)   shift_orb as a row     (column-index contribution)
    h0, s, linv, linvt : (bb, NO, NO)
    a   : (bb, NO, NO)  whitened second-order Fock matrix (input to eigh)
    """
    smat = shr_ref[...] + shc_ref[...]                       # VPU broadcasts
    h = h0_ref[...] + 0.5 * s_ref[...] * smat                # SCC Hamiltonian
    t = jnp.einsum('bij,bjk->bik', linv_ref[...], h,
                   preferred_element_type=jnp.float32)       # MXU
    a = jnp.einsum('bij,bjk->bik', t, linvt_ref[...],
                   preferred_element_type=jnp.float32)       # MXU
    a_ref[...] = a.astype(a_ref.dtype)


def _density_mulliken_kernel(occ_ref, v_ref, linvt_ref, s_ref, m_ref, ones_ref,
                             rho_ref, q_ref):
    """rho = C C^T with C = L^{-T} (sqrt(occ)*V); Mulliken charges via MXU dots."""
    cw = jnp.sqrt(occ_ref[...]) * v_ref[...]                 # column scaling
    c = jnp.einsum('bij,bjn->bin', linvt_ref[...], cw,
                   preferred_element_type=jnp.float32)       # back-transform
    rho = jnp.einsum('bin,bjn->bij', c, c,
                     preferred_element_type=jnp.float32)     # density matrix
    rho_ref[...] = rho.astype(rho_ref.dtype)
    p = rho * s_ref[...]
    # q[b, a] = sum_{o in atom a, j} p[b, o, j]; row-sum via ones vector first
    # (NO x NO work), then the one-hot atom map (NA x NO work) -- both MXU.
    q_orb = jnp.einsum('boj,bjk->bok', p, ones_ref[...],
                       preferred_element_type=jnp.float32)   # (bb, NO, 1)
    q = jnp.einsum('bao,bok->bak', m_ref[...], q_orb,
                   preferred_element_type=jnp.float32)       # (bb, NA, 1)
    q_ref[...] = q.astype(q_ref.dtype)


# ----------------------------------------------------------------------------
# Pallas wrappers (single grid step over the whole batch by default)
# ----------------------------------------------------------------------------
def whitened_fock(shift_orb, h0, s, l_inv, l_inv_t, *, batch_grid=1):
    """Dftb._second_order_ham hot path fused with the Cholesky whitening."""
    B, NO, _ = h0.shape
    bb = B // batch_grid
    spec = lambda d1, d2: pl.BlockSpec((bb, d1, d2), lambda g: (g, 0, 0))
    return pl.pallas_call(
        _whitened_fock_kernel,
        grid=(batch_grid,),
        in_specs=[spec(NO, 1), spec(1, NO), spec(NO, NO), spec(NO, NO),
                  spec(NO, NO), spec(NO, NO)],
        out_specs=spec(NO, NO),
        out_shape=jax.ShapeDtypeStruct((B, NO, NO), jnp.float32),
        compiler_params=pltpu.CompilerParams(
            dimension_semantics=("parallel",)),
    )(shift_orb[:, :, None], shift_orb[:, None, :], h0, s, l_inv, l_inv_t)


def density_mulliken(occ, v_white, l_inv_t, s, m_b, ones_b, *, batch_grid=1):
    """Density matrix + Mulliken atomic charges (Dftb.forward, non-PBC)."""
    B, NO = occ.shape
    NA = m_b.shape[1]
    occ3 = occ.reshape(B, 1, NO)
    bb = B // batch_grid
    spec = lambda d1, d2: pl.BlockSpec((bb, d1, d2), lambda g: (g, 0, 0))
    rho, q = pl.pallas_call(
        _density_mulliken_kernel,
        grid=(batch_grid,),
        in_specs=[spec(1, NO), spec(NO, NO), spec(NO, NO), spec(NO, NO),
                  spec(NA, NO), spec(NO, 1)],
        out_specs=[spec(NO, NO), spec(NA, 1)],
        out_shape=[jax.ShapeDtypeStruct((B, NO, NO), jnp.float32),
                   jax.ShapeDtypeStruct((B, NA, 1), jnp.float32)],
        compiler_params=pltpu.CompilerParams(
            dimension_semantics=("parallel",)),
    )(occ3, v_white, l_inv_t, s, m_b, ones_b)
    return rho, q.reshape(B, NA)


# ----------------------------------------------------------------------------
# Plain-JAX glue (eigensolver, Fermi smearing) -- no clean Pallas equivalent.
# ----------------------------------------------------------------------------
def cholesky_whitener(s):
    # TODO(synk): generalized symmetric eigendecomposition (maths.eighb) has no
    # Pallas equivalent; done with jnp.linalg (Cholesky + eigh).
    no = s.shape[-1]
    l = jnp.linalg.cholesky(s)
    eye = jnp.broadcast_to(jnp.eye(no, dtype=s.dtype), s.shape)
    return jnp.linalg.solve(l, eye)                      # L^{-1}


def fermi_occupation(eps, n_elec, kt):
    """fermi_search (bisection) + fermi_smearing * 2."""
    # TODO(synk): e_mask handling for ragged/padded orbitals omitted (no padding
    # in this synthetic batch).
    lo = eps.min(-1) - 1.0
    hi = eps.max(-1) + 1.0

    def n_of(ef):
        return (2.0 * jax.nn.sigmoid((ef[..., None] - eps) / kt)).sum(-1)

    def body(_, carry):
        lo, hi = carry
        mid = 0.5 * (lo + hi)
        too_low = n_of(mid) < n_elec
        return jnp.where(too_low, mid, lo), jnp.where(too_low, hi, mid)

    lo, hi = lax.fori_loop(0, 60, body, (lo, hi))
    ef = 0.5 * (lo + hi)
    return 2.0 * jax.nn.sigmoid((ef[..., None] - eps) / kt)


# ----------------------------------------------------------------------------
# SCC driver: whole loop inside one jit (lax.while_loop) -- no host sync.
# ----------------------------------------------------------------------------
def make_scc_runner(maxiter, mix, tol, kt, *, batch_grid=1):
    @jax.jit
    def run_scc(charge0, qzero, shift, m, h0, s, m_b, ones_b, n_elec):
        B, NO, _ = h0.shape
        l_inv = cholesky_whitener(s)          # overlap is fixed -> factor once
        l_inv_t = jnp.swapaxes(l_inv, -1, -2)

        def one_step(charge):
            dq = charge - qzero
            # shift_atom: torch.einsum('ij,ijk->ik'); shift_orb: repeat_interleave
            # via the one-hot map -- both trivially cheap, stays in plain JAX.
            shift_atom = jnp.einsum('bj,bja->ba', dq, shift)      # (B, NA)
            shift_orb = shift_atom @ m                            # (B, NO)
            a = whitened_fock(shift_orb, h0, s, l_inv, l_inv_t,
                              batch_grid=batch_grid)
            # eigh symmetrizes its input by default (A is symmetric up to fp).
            eps, v = jnp.linalg.eigh(a)
            occ = fermi_occupation(eps, n_elec, kt)
            rho, q_new = density_mulliken(occ, v, l_inv_t, s, m_b, ones_b,
                                          batch_grid=batch_grid)
            return q_new, rho, eps, occ

        # TODO(synk): Anderson mixer and per-system convergence masking replaced
        # by simple linear mixing + whole-batch max-|dq| convergence test.
        def cond(st):
            it, _, _, _, _, done = st
            return jnp.logical_and(it < maxiter, jnp.logical_not(done))

        def body(st):
            it, charge, _, _, _, _ = st
            q_new, rho_n, eps_n, occ_n = one_step(charge)
            diff = jnp.max(jnp.abs(q_new - charge))
            charge_n = charge + mix * (q_new - charge)
            return (it + 1, charge_n, rho_n, eps_n, occ_n, diff < tol)

        st0 = (jnp.int32(0), charge0,
               jnp.zeros((B, NO, NO), jnp.float32),
               jnp.zeros((B, NO), jnp.float32),
               jnp.zeros((B, NO), jnp.float32),
               jnp.array(False))
        it, charge, rho, eps, occ, done = lax.while_loop(cond, body, st0)
        return charge, rho, eps, occ, it, done

    return run_scc


# ----------------------------------------------------------------------------
# Pure-JAX references for kernel verification
# ----------------------------------------------------------------------------
def ref_second_order_ham(dq, shift, m, h0, s):
    shift_atom = jnp.einsum('bj,bja->ba', dq, shift)
    shift_orb = jnp.einsum('ba,ao->bo', shift_atom, m)
    smat = shift_orb[:, :, None] + shift_orb[:, None, :]
    return h0 + 0.5 * s * smat, smat


def ref_density_mulliken(occ, eigvec, s, m):
    c = jnp.sqrt(occ)[:, None, :] * eigvec
    rho = c @ jnp.swapaxes(c, -1, -2)
    q_orb = (rho * s).sum(-1)
    q_atom = jnp.einsum('bo,ao->ba', q_orb, m)
    return rho, q_atom


# ----------------------------------------------------------------------------
# Main: deterministic synthetic setup + SCC loop
# ----------------------------------------------------------------------------
if __name__ == "__main__":
    B = 2               # batch of molecules
    NA = 8              # atoms per molecule
    ORB_PER_ATOM = 4
    NO = NA * ORB_PER_ATOM        # 32 orbitals per molecule
    MAXITER = 60
    MIX = 0.2
    TOL = 1e-6
    KT = 300.0 * 3.166811563e-6   # 300 K in Hartree
    # On TPU v7x set BATCH_GRID = 2 so the 2 TensorCores each take half the
    # batch; on v5e/v6e keep 1 (fully collapsed grid, minimal per-step overhead).
    BATCH_GRID = 1
    assert B % BATCH_GRID == 0

    key = jax.random.PRNGKey(0)
    k_pos, k_u, k_s, k_h, k_dq = jax.random.split(key, 5)

    # --- synthetic deterministic "geometry" and SK parameters -----------------
    # TODO(synk): SKF file feeds / Geometry parsing replaced by deterministic
    # synthetic parameters (no .skf/.h5 data available in-script).
    pos = jax.random.uniform(k_pos, (B, NA, 3), jnp.float32, -3.0, 3.0)
    diffv = pos[:, :, None, :] - pos[:, None, :, :]
    dist = jnp.sqrt(jnp.sum(diffv * diffv, -1))
    eye_na = jnp.eye(NA, dtype=jnp.float32)
    inv_dist = jnp.where(dist != 0.0, 1.0 / jnp.where(dist != 0.0, dist, 1.0), 0.0)

    u = 0.3 + 0.05 * jax.random.uniform(k_u, (B, NA), jnp.float32)    # Hubbard U
    uij = 0.5 * (1.0 / u[:, :, None] + 1.0 / u[:, None, :])
    gamma_full = (1.0 / jnp.sqrt(dist * dist + uij * uij)) * (1.0 - eye_na) \
                 + eye_na * u[:, None, :]
    short_gamma = inv_dist - gamma_full
    shift = inv_dist - short_gamma                       # Dftb._get_shift

    qzero = jnp.full((B, NA), 4.0, jnp.float32)
    n_elec = qzero.sum(-1)

    # one-hot atom -> orbital map (repeat_interleave / Mulliken segment sums)
    atom_of_orb = jnp.repeat(jnp.arange(NA), ORB_PER_ATOM)
    M = (atom_of_orb[None, :] == jnp.arange(NA)[:, None]).astype(jnp.float32)  # (NA,NO)
    M_b = jnp.broadcast_to(M[None], (B, NA, NO))
    ones_b = jnp.ones((B, NO, 1), jnp.float32)

    # synthetic (non-SCC) Hamiltonian H0 and SPD overlap S
    g = 0.1 * jax.random.normal(k_s, (B, NO, NO), jnp.float32)
    S = jnp.broadcast_to(jnp.eye(NO, dtype=jnp.float32), (B, NO, NO)) \
        + 0.1 * (g @ jnp.swapaxes(g, -1, -2)) / NO
    hr = 0.05 * jax.random.normal(k_h, (B, NO, NO), jnp.float32)
    H0 = 0.5 * (hr + jnp.swapaxes(hr, -1, -2)) \
        + jnp.diag(jnp.linspace(-0.6, -0.1, NO).astype(jnp.float32))[None]

    # --- kernel correctness checks against pure-JAX references ---------------
    dq_test = 0.1 * jax.random.normal(k_dq, (B, NA), jnp.float32)
    shift_orb_t = jnp.einsum('bj,bja->ba', dq_test, shift) @ M
    l_inv0 = cholesky_whitener(S)
    l_inv0_t = jnp.swapaxes(l_inv0, -1, -2)

    a_k = whitened_fock(shift_orb_t, H0, S, l_inv0, l_inv0_t,
                        batch_grid=BATCH_GRID)
    h_r, _ = ref_second_order_ham(dq_test, shift, M, H0, S)
    # TODO(synk): shift_mat (self._shift_mat) is not materialized (unused in the
    # SCC loop); recompute from shift_orb if ever needed.
    a_r = l_inv0 @ h_r @ l_inv0_t
    assert jnp.allclose(a_k, a_r, atol=5e-3, rtol=5e-3), "whitened Fock mismatch"

    a_sym = 0.5 * (a_r + jnp.swapaxes(a_r, -1, -2))
    eps_t, v_t = jnp.linalg.eigh(a_sym)                 # whitened-problem eigvecs
    occ_t = fermi_occupation(eps_t, n_elec, KT)
    rho_k, q_k = density_mulliken(occ_t, v_t, l_inv0_t, S, M_b, ones_b,
                                  batch_grid=BATCH_GRID)
    c_t = l_inv0_t @ v_t                                 # generalized eigvecs
    rho_r, q_r = ref_density_mulliken(occ_t, c_t, S, M)
    assert jnp.allclose(rho_k, rho_r, atol=5e-3, rtol=5e-3), "rho mismatch"
    assert jnp.allclose(q_k, q_r, atol=5e-3, rtol=5e-3), "mulliken mismatch"

    # --- SCC loop (Dftb2.forward) -- single jit, no per-iteration host sync ---
    # TODO(synk): periodic (k-point) branch of Dftb.forward not implemented.
    scc = make_scc_runner(MAXITER, MIX, TOL, KT, batch_grid=BATCH_GRID)
    charge, rho, eps, occ, n_iter, converged = scc(
        qzero, qzero, shift, M, H0, S, M_b, ones_b, n_elec)

    charge = jax.block_until_ready(charge)
    rho = jax.block_until_ready(rho)
    assert bool(jnp.all(jnp.isfinite(charge))) and bool(jnp.all(jnp.isfinite(rho)))
    print("KERNEL_OK")
</pallas_src>

<mosaic_0001>
module attributes {stable_mosaic.version = 11 : i64} {
  func.func @_whitened_fock_kernel(%arg0: i32, %arg1: memref<2x32x1xf32, #tpu.memory_space<vmem>>, %arg2: memref<2x1x32xf32, #tpu.memory_space<vmem>>, %arg3: memref<2x32x32xf32, #tpu.memory_space<vmem>>, %arg4: memref<2x32x32xf32, #tpu.memory_space<vmem>>, %arg5: memref<2x32x32xf32, #tpu.memory_space<vmem>>, %arg6: memref<2x32x32xf32, #tpu.memory_space<vmem>>, %arg7: memref<2x32x32xf32, #tpu.memory_space<vmem>>) attributes {dimension_semantics = [#tpu.dimension_semantics<parallel>], iteration_bounds = array<i64: 1>, scalar_prefetch = 0 : i64, scratch_operands = 0 : i64, tpu.core_type = #tpu.core_type<tc>, window_params = [{transform_indices = @transform_0, window_bounds = array<i64: 2, 32, 1>}, {transform_indices = @transform_1, window_bounds = array<i64: 2, 1, 32>}, {transform_indices = @transform_2, window_bounds = array<i64: 2, 32, 32>}, {transform_indices = @transform_3, window_bounds = array<i64: 2, 32, 32>}, {transform_indices = @transform_4, window_bounds = array<i64: 2, 32, 32>}, {transform_indices = @transform_5, window_bounds = array<i64: 2, 32, 32>}, {transform_indices = @transform_6, window_bounds = array<i64: 2, 32, 32>}]} {
    %c0 = arith.constant 0 : index
    %c0_0 = arith.constant 0 : index
    %c0_1 = arith.constant 0 : index
    %0 = vector.load %arg1[%c0, %c0_0, %c0_1] : memref<2x32x1xf32, #tpu.memory_space<vmem>>, vector<2x32x1xf32>
    %c0_2 = arith.constant 0 : index
    %c0_3 = arith.constant 0 : index
    %c0_4 = arith.constant 0 : index
    %1 = vector.load %arg2[%c0_2, %c0_3, %c0_4] : memref<2x1x32xf32, #tpu.memory_space<vmem>>, vector<2x1x32xf32>
    %2 = vector.broadcast %0 : vector<2x32x1xf32> to vector<2x32x32xf32>
    %3 = vector.broadcast %1 : vector<2x1x32xf32> to vector<2x32x32xf32>
    %4 = arith.addf %2, %3 : vector<2x32x32xf32>
    %c0_5 = arith.constant 0 : index
    %c0_6 = arith.constant 0 : index
    %c0_7 = arith.constant 0 : index
    %5 = vector.load %arg3[%c0_5, %c0_6, %c0_7] : memref<2x32x32xf32, #tpu.memory_space<vmem>>, vector<2x32x32xf32>
    %c0_8 = arith.constant 0 : index
    %c0_9 = arith.constant 0 : index
    %c0_10 = arith.constant 0 : index
    %6 = vector.load %arg4[%c0_8, %c0_9, %c0_10] : memref<2x32x32xf32, #tpu.memory_space<vmem>>, vector<2x32x32xf32>
    %cst = arith.constant 5.000000e-01 : f32
    %7 = vector.broadcast %cst : f32 to vector<2x32x32xf32>
    %8 = arith.mulf %7, %6 : vector<2x32x32xf32>
    %9 = arith.mulf %8, %4 : vector<2x32x32xf32>
    %10 = arith.addf %5, %9 : vector<2x32x32xf32>
    %c0_11 = arith.constant 0 : index
    %c0_12 = arith.constant 0 : index
    %c0_13 = arith.constant 0 : index
    %11 = vector.load %arg5[%c0_11, %c0_12, %c0_13] : memref<2x32x32xf32, #tpu.memory_space<vmem>>, vector<2x32x32xf32>
    "tpu.trace_start"() <{level = 10 : i32, message = "bij,bjk->bik"}> : () -> ()
    %cst_14 = arith.constant dense<0.000000e+00> : vector<2x32x32xf32>
    %12 = tpu.matmul %11, %10, %cst_14 {dimension_numbers = #tpu.dot_dimension_numbers<[2], [1], [1], [2], [0, 0, 0, 1, 1, 2], [0], [0]>} : vector<2x32x32xf32>, vector<2x32x32xf32>, vector<2x32x32xf32> -> vector<2x32x32xf32>
    "tpu.trace_stop"() : () -> ()
    %c0_15 = arith.constant 0 : index
    %c0_16 = arith.constant 0 : index
    %c0_17 = arith.constant 0 : index
    %13 = vector.load %arg6[%c0_15, %c0_16, %c0_17] : memref<2x32x32xf32, #tpu.memory_space<vmem>>, vector<2x32x32xf32>
    "tpu.trace_start"() <{level = 10 : i32, message = "bij,bjk->bik"}> : () -> ()
    %cst_18 = arith.constant dense<0.000000e+00> : vector<2x32x32xf32>
    %14 = tpu.matmul %12, %13, %cst_18 {dimension_numbers = #tpu.dot_dimension_numbers<[2], [1], [1], [2], [0, 0, 0, 1, 1, 2], [0], [0]>} : vector<2x32x32xf32>, vector<2x32x32xf32>, vector<2x32x32xf32> -> vector<2x32x32xf32>
    "tpu.trace_stop"() : () -> ()
    %c0_19 = arith.constant 0 : index
    %c0_20 = arith.constant 0 : index
    %c0_21 = arith.constant 0 : index
    %15 = vector.load %arg7[%c0_19, %c0_20, %c0_21] : memref<2x32x32xf32, #tpu.memory_space<vmem>>, vector<2x32x32xf32>
    tpu.vector_store %arg7[%c0_19, %c0_20, %c0_21], %14 {strides = array<i32>} : memref<2x32x32xf32, #tpu.memory_space<vmem>>, vector<2x32x32xf32>,
    return
  }
  func.func @transform_0(%arg0: i32) -> (i32, i32, i32) {
    %c0_i32 = arith.constant 0 : i32
    %c0_i32_0 = arith.constant 0 : i32
    %c0_i32_1 = arith.constant 0 : i32
    return %arg0, %c0_i32, %c0_i32_0 : i32, i32, i32
  }
  func.func @transform_1(%arg0: i32) -> (i32, i32, i32) {
    %c0_i32 = arith.constant 0 : i32
    %c0_i32_0 = arith.constant 0 : i32
    %c0_i32_1 = arith.constant 0 : i32
    return %arg0, %c0_i32, %c0_i32_0 : i32, i32, i32
  }
  func.func @transform_2(%arg0: i32) -> (i32, i32, i32) {
    %c0_i32 = arith.constant 0 : i32
    %c0_i32_0 = arith.constant 0 : i32
    %c0_i32_1 = arith.constant 0 : i32
    return %arg0, %c0_i32, %c0_i32_0 : i32, i32, i32
  }
  func.func @transform_3(%arg0: i32) -> (i32, i32, i32) {
    %c0_i32 = arith.constant 0 : i32
    %c0_i32_0 = arith.constant 0 : i32
    %c0_i32_1 = arith.constant 0 : i32
    return %arg0, %c0_i32, %c0_i32_0 : i32, i32, i32
  }
  func.func @transform_4(%arg0: i32) -> (i32, i32, i32) {
    %c0_i32 = arith.constant 0 : i32
    %c0_i32_0 = arith.constant 0 : i32
    %c0_i32_1 = arith.constant 0 : i32
    return %arg0, %c0_i32, %c0_i32_0 : i32, i32, i32
  }
  func.func @transform_5(%arg0: i32) -> (i32, i32, i32) {
    %c0_i32 = arith.constant 0 : i32
    %c0_i32_0 = arith.constant 0 : i32
    %c0_i32_1 = arith.constant 0 : i32
    return %arg0, %c0_i32, %c0_i32_0 : i32, i32, i32
  }
  func.func @transform_6(%arg0: i32) -> (i32, i32, i32) {
    %c0_i32 = arith.constant 0 : i32
    %c0_i32_0 = arith.constant 0 : i32
    %c0_i32_1 = arith.constant 0 : i32
    return %arg0, %c0_i32, %c0_i32_0 : i32, i32, i32
  }
}

</mosaic_0001>

<llo_original>
// kernel: tpu_custom_call.1
$region0: #{tpu_custom_call.1}
  #allocation0 [shape = 'u32[]', space=smem, size = 0x4, offset = 0x4, fixed_abs, tag = 'smem constant byte address 0x4 - core index']
  #allocation1 [shape = 'u32[144,128]{1,0:T(1,128)}', space=vmem, size = 0x12000, scoped, tag = 'internal scratch']
  %s0 = inlined_call_operand.vmem [shape: f32[2,32,1], index: 0, kind: input, shape index: {}]
  %s1 = inlined_call_operand.vmem [shape: f32[2,1,32], index: 1, kind: input, shape index: {}]
  %s2 = inlined_call_operand.vmem [shape: f32[2,32,32], index: 2, kind: input, shape index: {}]
  %s3 = inlined_call_operand.hbm [shape: f32[2,32,32], index: 3, kind: input, shape index: {}]
  %s4 = inlined_call_operand.hbm [shape: f32[2,32,32], index: 4, kind: input, shape index: {}]
  %s5 = inlined_call_operand.hbm [shape: f32[2,32,32], index: 5, kind: input, shape index: {}]
  %s6 = inlined_call_operand.hbm [shape: f32[2,32,32], index: 6, kind: output, shape index: {}]
  %s7 = sld [smem:[#allocation0]]
  $region46: #{tpu_custom_call.1} parent=0
    _
  %s9 = ssub.s32 1, %s7
  %s10 = scalar_select 0, %s9, %s7
  $region1: #{tpu_custom_call.1} parent=0
    #allocation2 [shape = 'u8[32768]{0}', space=vmem, size = 0x8000, scoped, tag = 'input window, operand 3, single buffered']
    #allocation3 [shape = 's32[1]{0}', space=sflag, size = 0x4, scoped, tag = 'scoped memory for tpu_custom_call.1']
    #allocation4 [shape = 's32[1]{0}', space=sflag, size = 0x4, scoped, tag = 'scoped memory for tpu_custom_call.1']
    #allocation5 [shape = 'u8[32768]{0}', space=vmem, size = 0x8000, scoped, tag = 'input window, operand 4, single buffered']
    #allocation6 [shape = 's32[1]{0}', space=sflag, size = 0x4, scoped, tag = 'scoped memory for tpu_custom_call.1']
    #allocation7 [shape = 'u8[32768]{0}', space=vmem, size = 0x8000, scoped, tag = 'input window, operand 5, single buffered']
    #allocation8 [shape = 'u8[32768]{0}', space=vmem, size = 0x8000, scoped, tag = 'output window, operand 0, single buffered']
    %11 = vsyncpa [#allocation3], 0
    %12 = vsyncpa [#allocation6], 0
    %13 = vsyncpa [#allocation4], 0
    // Predicated region
    $region2: #{tpu_custom_call.1} parent=1 // pred_check
      _
    $region3: #{tpu_custom_call.1} parent=1 // pred_check_branch
      %15 = sbr.rel (0) target = $region5
    $region4: #{tpu_custom_call.1} parent=1 // pred_region
      _
    $region5: #{tpu_custom_call.1} parent=1 // pred_fallthru
      _
    // Predicated region
    $region6: #{tpu_custom_call.1} parent=1 // pred_check
      _
    $region7: #{tpu_custom_call.1} parent=1 // pred_check_branch
      %17 = sbr.rel (0) target = $region9
    $region8: #{tpu_custom_call.1} parent=1 // pred_region
      _
    $region9: #{tpu_custom_call.1} parent=1 // pred_fallthru
      _
    // Predicated region
    $region10: #{tpu_custom_call.1} parent=1 // pred_check
      _
    $region11: #{tpu_custom_call.1} parent=1 // pred_check_branch
      %19 = sbr.rel (0) target = $region13
    $region12: #{tpu_custom_call.1} parent=1 // pred_region
      _
    $region13: #{tpu_custom_call.1} parent=1 // pred_fallthru
      _
    // Predicated region
    $region14: #{tpu_custom_call.1} parent=1 // pred_check
      _
    $region15: #{tpu_custom_call.1} parent=1 // pred_check_branch
      %21 = sbr.rel (0) target = $region17
    $region16: #{tpu_custom_call.1} parent=1 // pred_region
      %s23 = ssub.s32 1024, 1024
      %24 = vsyncadd [#allocation3], %s23
      %s25 = sshll.u32 [#allocation2], 4
      %s26 = int_to_ptr.vmem [resolvable:$true] %s25
      %31 = dma.hbm_to_vmem [thread:$0]  %s3, 1024, %s26, [#allocation3], 128, 128, 8
    $region17: #{tpu_custom_call.1} parent=1 // pred_fallthru
      _
    // Predicated region
    $region18: #{tpu_custom_call.1} parent=1 // pred_check
      _
    $region19: #{tpu_custom_call.1} parent=1 // pred_check_branch
      %33 = sbr.rel (0) target = $region21
    $region20: #{tpu_custom_call.1} parent=1 // pred_region
      %s35 = ssub.s32 1024, 1024
      %36 = vsyncadd [#allocation6], %s35
      %s37 = sshll.u32 [#allocation5], 4
      %s38 = int_to_ptr.vmem [resolvable:$true] %s37
      %43 = dma.hbm_to_vmem [thread:$0]  %s4, 1024, %s38, [#allocation6], 128, 128, 8
    $region21: #{tpu_custom_call.1} parent=1 // pred_fallthru
      _
    // Predicated region
    $region22: #{tpu_custom_call.1} parent=1 // pred_check
      _
    $region23: #{tpu_custom_call.1} parent=1 // pred_check_branch
      %45 = sbr.rel (0) target = $region25
    $region24: #{tpu_custom_call.1} parent=1 // pred_region
      %s47 = ssub.s32 1024, 1024
      %48 = vsyncadd [#allocation6], %s47
      %s49 = sshll.u32 [#allocation7], 4
      %s50 = int_to_ptr.vmem [resolvable:$true] %s49
      %55 = dma.hbm_to_vmem [thread:$0]  %s5, 1024, %s50, [#allocation6], 128, 128, 8
    $region25: #{tpu_custom_call.1} parent=1 // pred_fallthru
      _
    // Predicated region
    $region26: #{tpu_custom_call.1} parent=1 // pred_check
      _
    $region27: #{tpu_custom_call.1} parent=1 // pred_check_branch
      %57 = sbr.rel (0) target = $region29
    $region28: #{tpu_custom_call.1} parent=1 // pred_region
      %58 = dma.done [#allocation3], 1024
    $region29: #{tpu_custom_call.1} parent=1 // pred_fallthru
      _
    // Predicated region
    $region30: #{tpu_custom_call.1} parent=1 // pred_check
      _
    $region31: #{tpu_custom_call.1} parent=1 // pred_check_branch
      %60 = sbr.rel (0) target = $region33
    $region32: #{tpu_custom_call.1} parent=1 // pred_region
      %61 = dma.done [#allocation6], 1024
    $region33: #{tpu_custom_call.1} parent=1 // pred_fallthru
      _
    // Predicated region
    $region34: #{tpu_custom_call.1} parent=1 // pred_check
      _
    $region35: #{tpu_custom_call.1} parent=1 // pred_check_branch
      %63 = sbr.rel (0) target = $region37
    $region36: #{tpu_custom_call.1} parent=1 // pred_region
      %64 = dma.done [#allocation6], 1024
    $region37: #{tpu_custom_call.1} parent=1 // pred_fallthru
      _
    %v65 = vld [vmem:[%s0] sm:$0xff]
    %v66 = vld [vmem:[%s0 + $0x8] sm:$0xff]
    %v67 = vld [vmem:[%s0 + $0x10] sm:$0xff]
    %v68 = vld [vmem:[%s0 + $0x18] sm:$0xff]
    %v69 = vld [vmem:[%s0 + $0x20] sm:$0xff]
    %v70 = vld [vmem:[%s0 + $0x28] sm:$0xff]
    %v71 = vld [vmem:[%s0 + $0x30] sm:$0xff]
    %v72 = vld [vmem:[%s0 + $0x38] sm:$0xff]
    %v73 = vld [vmem:[%s1] sm:$0x1]
    %v74 = vld [vmem:[%s1 + $0x1] sm:$0x1]
    %76 = vset.pattern.permute.xlu0 0
    %77 = vperm.xlu0 %76, %v65
    %v78 = vpop.permute.xlu0 %77
    %81 = vset.pattern.permute.xlu0 0
    %82 = vperm.xlu0 %81, %v66
    %v83 = vpop.permute.xlu0 %82
    %86 = vset.pattern.permute.xlu0 0
    %87 = vperm.xlu0 %86, %v67
    %v88 = vpop.permute.xlu0 %87
    %91 = vset.pattern.permute.xlu0 0
    %92 = vperm.xlu0 %91, %v68
    %v93 = vpop.permute.xlu0 %92
    %96 = vset.pattern.permute.xlu0 0
    %97 = vperm.xlu0 %96, %v69
    %v98 = vpop.permute.xlu0 %97
    %101 = vset.pattern.permute.xlu0 0
    %102 = vperm.xlu0 %101, %v70
    %v103 = vpop.permute.xlu0 %102
    %106 = vset.pattern.permute.xlu0 0
    %107 = vperm.xlu0 %106, %v71
    %v108 = vpop.permute.xlu0 %107
    %111 = vset.pattern.permute.xlu0 0
    %112 = vperm.xlu0 %111, %v72
    %v113 = vpop.permute.xlu0 %112
    %v117 = vlaneseq
    %v118 = vshrl.u32 %v117, 7
    %v119 = vsub.s32 0, %v118
    %v120 = vrot.slane %v73, %v119
    %v121 = vlaneseq
    %v122 = vshrl.u32 %v121, 7
    %v123 = vsub.s32 0, %v122
    %v124 = vrot.slane %v74, %v123
    %v127 = vadd.f32 %v78, %v120
    %v128 = vadd.f32 %v83, %v120
    %v129 = vadd.f32 %v88, %v120
    %v130 = vadd.f32 %v93, %v120
    %v131 = vadd.f32 %v98, %v124
    %v132 = vadd.f32 %v103, %v124
    %v133 = vadd.f32 %v108, %v124
    %v134 = vadd.f32 %v113, %v124
    %v135 = vld [vmem:[%s2] sm:$0xff]
    %v136 = vld [vmem:[%s2 + $0x8] sm:$0xff]
    %v137 = vld [vmem:[%s2 + $0x10] sm:$0xff]
    %v138 = vld [vmem:[%s2 + $0x18] sm:$0xff]
    %v139 = vld [vmem:[%s2 + $0x20] sm:$0xff]
    %v140 = vld [vmem:[%s2 + $0x28] sm:$0xff]
    %v141 = vld [vmem:[%s2 + $0x30] sm:$0xff]
    %v142 = vld [vmem:[%s2 + $0x38] sm:$0xff]
    %v143 = vld [vmem:[#allocation2] sm:$0xff]
    %v144 = vld [vmem:[#allocation2 + $0x8] sm:$0xff]
    %v145 = vld [vmem:[#allocation2 + $0x10] sm:$0xff]
    %v146 = vld [vmem:[#allocation2 + $0x18] sm:$0xff]
    %v147 = vld [vmem:[#allocation2 + $0x20] sm:$0xff]
    %v148 = vld [vmem:[#allocation2 + $0x28] sm:$0xff]
    %v149 = vld [vmem:[#allocation2 + $0x30] sm:$0xff]
    %v150 = vld [vmem:[#allocation2 + $0x38] sm:$0xff]
    %v151 = vmul.f32 %v143, 0.5
    %v152 = vmul.f32 %v144, 0.5
    %v153 = vmul.f32 %v145, 0.5
    %v154 = vmul.f32 %v146, 0.5
    %v155 = vmul.f32 %v147, 0.5
    %v156 = vmul.f32 %v148, 0.5
    %v157 = vmul.f32 %v149, 0.5
    %v158 = vmul.f32 %v150, 0.5
    %v159 = vmul.f32 %v151, %v127
    %v160 = vmul.f32 %v152, %v128
    %v161 = vmul.f32 %v153, %v129
    %v162 = vmul.f32 %v154, %v130
    %v163 = vmul.f32 %v155, %v131
    %v164 = vmul.f32 %v156, %v132
    %v165 = vmul.f32 %v157, %v133
    %v166 = vmul.f32 %v158, %v134
    %v167 = vadd.f32 %v135, %v159
    %v168 = vadd.f32 %v136, %v160
    %v169 = vadd.f32 %v137, %v161
    %v170 = vadd.f32 %v138, %v162
    %v171 = vadd.f32 %v139, %v163
    %v172 = vadd.f32 %v140, %v164
    %v173 = vadd.f32 %v141, %v165
    %v174 = vadd.f32 %v142, %v166
    %v175 = vld [vmem:[#allocation5] sm:$0xff]
    %v176 = vld [vmem:[#allocation5 + $0x8] sm:$0xff]
    %v177 = vld [vmem:[#allocation5 + $0x10] sm:$0xff]
    %v178 = vld [vmem:[#allocation5 + $0x18] sm:$0xff]
    %v179 = vld [vmem:[#allocation5 + $0x20] sm:$0xff]
    %v180 = vld [vmem:[#allocation5 + $0x28] sm:$0xff]
    %v181 = vld [vmem:[#allocation5 + $0x30] sm:$0xff]
    %v182 = vld [vmem:[#allocation5 + $0x38] sm:$0xff]
    %vm183 = vcmask 261120
    %v185 = vsel %vm183, %v175, 0
    %v188 = vsel %vm183, %v176, 0
    %v191 = vsel %vm183, %v177, 0
    %v194 = vsel %vm183, %v178, 0
    %196 = vmatprep.subr.mxu0 0.0
    %197 = vmatpush1.msra.mxu0 %v167
    %198 = vmatprep.subr.mxu0 0.0
    %199 = vmatpush1.msra.mxu0 %v168
    %200 = vmatprep.subr.mxu0 0.0
    %201 = vmatpush1.msra.mxu0 %v169
    %202 = vmatprep.subr.mxu0 0.0
    %203 = vmatpush1.msra.mxu0 %v170
    %204 = vmatprep.subr.mxu0 0.0
    %205 = vmatpush1.msra.mxu0 0.0
    %206 = vmatprep.subr.mxu0 0.0
    %207 = vmatpush1.msra.mxu0 0.0
    %208 = vmatprep.subr.mxu0 0.0
    %209 = vmatpush1.msra.mxu0 0.0
    %210 = vmatprep.subr.mxu0 0.0
    %211 = vmatpush1.msra.mxu0 0.0
    %212 = vmatprep.subr.mxu0 0.0
    %213 = vmatpush1.msra.mxu0 0.0
    %214 = vmatprep.subr.mxu0 0.0
    %215 = vmatpush1.msra.mxu0 0.0
    %216 = vmatprep.subr.mxu0 0.0
    %217 = vmatpush1.msra.mxu0 0.0
    %218 = vmatprep.subr.mxu0 0.0
    %219 = vmatpush1.msra.mxu0 0.0
    %220 = vmatprep.subr.mxu0 0.0
    %221 = vmatpush1.msra.mxu0 0.0
    %222 = vmatprep.subr.mxu0 0.0
    %223 = vmatpush1.msra.mxu0 0.0
    %224 = vmatprep.subr.mxu0 0.0
    %225 = vmatpush1.msra.mxu0 0.0
    %226 = vmatprep.subr.mxu0 0.0
    %227 = vmatpush1.msra.mxu0 0.0
    %228 = vmatprep.subr.mxu0 0.0
    %229 = vmatpush1.msra.mxu0 0.0
    %230 = vmatprep.subr.mxu0 0.0
    %231 = vmatpush1.msra.mxu0 0.0
    %232 = vmatprep.subr.mxu0 0.0
    %233 = vmatpush1.msra.mxu0 0.0
    %234 = vmatprep.subr.mxu0 0.0
    %235 = vmatpush1.msra.mxu0 0.0
    %236 = vmatprep.subr.mxu0 0.0
    %237 = vmatpush1.msra.mxu0 0.0
    %238 = vmatprep.subr.mxu0 0.0
    %239 = vmatpush1.msra.mxu0 0.0
    %240 = vmatprep.subr.mxu0 0.0
    %241 = vmatpush1.msra.mxu0 0.0
    %242 = vmatprep.subr.mxu0 0.0
    %243 = vmatpush1.msra.mxu0 0.0
    %244 = vmatprep.subr.mxu0 0.0
    %245 = vmatpush1.msra.mxu0 0.0
    %246 = vmatprep.subr.mxu0 0.0
    %247 = vmatpush1.msra.mxu0 0.0
    %248 = vmatprep.subr.mxu0 0.0
    %249 = vmatpush1.msra.mxu0 0.0
    %250 = vmatprep.subr.mxu0 0.0
    %251 = vmatpush1.msra.mxu0 0.0
    %252 = vmatprep.subr.mxu0 0.0
    %253 = vmatpush1.msra.mxu0 0.0
    %254 = vmatprep.subr.mxu0 0.0
    %255 = vmatpush1.msra.mxu0 0.0
    %256 = vmatprep.subr.mxu0 0.0
    %257 = vmatpush1.msra.mxu0 0.0
    %258 = vmatprep.subr.mxu0 0.0
    %259 = vmatpush1.msra.mxu0 0.0
    %260 = vmatprep.mubr.f32.mxu0 0.0
    %261 = vmatmul.mubr.f32.gmra.mrb[0].mxu0 %v185
    %v262 = vpop.f32.mrb[0].mxu0
    %v263 = vadd.f32 0.0, %v262
    %v264 = vpop.f32.mrb[0].mxu0
    %265 = vmatprep.mubr.f32.mxu0 0.0
    %266 = vmatmul.mubr.f32.gmra.mrb[0].mxu0 %v188
    %v267 = vpop.f32.mrb[0].mxu0
    %v268 = vadd.f32 0.0, %v267
    %v269 = vpop.f32.mrb[0].mxu0
    %270 = vmatprep.mubr.f32.mxu0 0.0
    %271 = vmatmul.mubr.f32.gmra.mrb[0].mxu0 %v191
    %v272 = vpop.f32.mrb[0].mxu0
    %v273 = vadd.f32 0.0, %v272
    %v274 = vpop.f32.mrb[0].mxu0
    %275 = vmatprep.mubr.f32.mxu0 0.0
    %276 = vmatmul.mubr.f32.gmra.mrb[0].mxu0 %v194
    %v277 = vpop.f32.mrb[0].mxu0
    %v278 = vadd.f32 0.0, %v277
    %v279 = vpop.f32.mrb[0].mxu0
    %280 = vdwg.mxu0
    %v282 = vsel %vm183, %v179, 0
    %v285 = vsel %vm183, %v180, 0
    %v288 = vsel %vm183, %v181, 0
    %v291 = vsel %vm183, %v182, 0
    %293 = vmatprep.subr.mxu0 0.0
    %294 = vmatpush1.msra.mxu0 %v171
    %295 = vmatprep.subr.mxu0 0.0
    %296 = vmatpush1.msra.mxu0 %v172
    %297 = vmatprep.subr.mxu0 0.0
    %298 = vmatpush1.msra.mxu0 %v173
    %299 = vmatprep.subr.mxu0 0.0
    %300 = vmatpush1.msra.mxu0 %v174
    %301 = vmatprep.subr.mxu0 0.0
    %302 = vmatpush1.msra.mxu0 0.0
    %303 = vmatprep.subr.mxu0 0.0
    %304 = vmatpush1.msra.mxu0 0.0
    %305 = vmatprep.subr.mxu0 0.0
    %306 = vmatpush1.msra.mxu0 0.0
    %307 = vmatprep.subr.mxu0 0.0
    %308 = vmatpush1.msra.mxu0 0.0
    %309 = vmatprep.subr.mxu0 0.0
    %310 = vmatpush1.msra.mxu0 0.0
    %311 = vmatprep.subr.mxu0 0.0
    %312 = vmatpush1.msra.mxu0 0.0
    %313 = vmatprep.subr.mxu0 0.0
    %314 = vmatpush1.msra.mxu0 0.0
    %315 = vmatprep.subr.mxu0 0.0
    %316 = vmatpush1.msra.mxu0 0.0
    %317 = vmatprep.subr.mxu0 0.0
    %318 = vmatpush1.msra.mxu0 0.0
    %319 = vmatprep.subr.mxu0 0.0
    %320 = vmatpush1.msra.mxu0 0.0
    %321 = vmatprep.subr.mxu0 0.0
    %322 = vmatpush1.msra.mxu0 0.0
    %323 = vmatprep.subr.mxu0 0.0
    %324 = vmatpush1.msra.mxu0 0.0
    %325 = vmatprep.subr.mxu0 0.0
    %326 = vmatpush1.msra.mxu0 0.0
    %327 = vmatprep.subr.mxu0 0.0
    %328 = vmatpush1.msra.mxu0 0.0
    %329 = vmatprep.subr.mxu0 0.0
    %330 = vmatpush1.msra.mxu0 0.0
    %331 = vmatprep.subr.mxu0 0.0
    %332 = vmatpush1.msra.mxu0 0.0
    %333 = vmatprep.subr.mxu0 0.0
    %334 = vmatpush1.msra.mxu0 0.0
    %335 = vmatprep.subr.mxu0 0.0
    %336 = vmatpush1.msra.mxu0 0.0
    %337 = vmatprep.subr.mxu0 0.0
    %338 = vmatpush1.msra.mxu0 0.0
    %339 = vmatprep.subr.mxu0 0.0
    %340 = vmatpush1.msra.mxu0 0.0
    %341 = vmatprep.subr.mxu0 0.0
    %342 = vmatpush1.msra.mxu0 0.0
    %343 = vmatprep.subr.mxu0 0.0
    %344 = vmatpush1.msra.mxu0 0.0
    %345 = vmatprep.subr.mxu0 0.0
    %346 = vmatpush1.msra.mxu0 0.0
    %347 = vmatprep.subr.mxu0 0.0
    %348 = vmatpush1.msra.mxu0 0.0
    %349 = vmatprep.subr.mxu0 0.0
    %350 = vmatpush1.msra.mxu0 0.0
    %351 = vmatprep.subr.mxu0 0.0
    %352 = vmatpush1.msra.mxu0 0.0
    %353 = vmatprep.subr.mxu0 0.0
    %354 = vmatpush1.msra.mxu0 0.0
    %355 = vmatprep.subr.mxu0 0.0
    %356 = vmatpush1.msra.mxu0 0.0
    %357 = vmatprep.mubr.f32.mxu0 0.0
    %358 = vmatmul.mubr.f32.gmra.mrb[0].mxu0 %v282
    %v359 = vpop.f32.mrb[0].mxu0
    %v360 = vadd.f32 0.0, %v359
    %v361 = vpop.f32.mrb[0].mxu0
    %362 = vmatprep.mubr.f32.mxu0 0.0
    %363 = vmatmul.mubr.f32.gmra.mrb[0].mxu0 %v285
    %v364 = vpop.f32.mrb[0].mxu0
    %v365 = vadd.f32 0.0, %v364
    %v366 = vpop.f32.mrb[0].mxu0
    %367 = vmatprep.mubr.f32.mxu0 0.0
    %368 = vmatmul.mubr.f32.gmra.mrb[0].mxu0 %v288
    %v369 = vpop.f32.mrb[0].mxu0
    %v370 = vadd.f32 0.0, %v369
    %v371 = vpop.f32.mrb[0].mxu0
    %372 = vmatprep.mubr.f32.mxu0 0.0
    %373 = vmatmul.mubr.f32.gmra.mrb[0].mxu0 %v291
    %v374 = vpop.f32.mrb[0].mxu0
    %v375 = vadd.f32 0.0, %v374
    %v376 = vpop.f32.mrb[0].mxu0
    %377 = vdwg.mxu0
    %v378 = vld [vmem:[#allocation7] sm:$0xff]
    %v379 = vld [vmem:[#allocation7 + $0x8] sm:$0xff]
    %v380 = vld [vmem:[#allocation7 + $0x10] sm:$0xff]
    %v381 = vld [vmem:[#allocation7 + $0x18] sm:$0xff]
    %v382 = vld [vmem:[#allocation7 + $0x20] sm:$0xff]
    %v383 = vld [vmem:[#allocation7 + $0x28] sm:$0xff]
    %v384 = vld [vmem:[#allocation7 + $0x30] sm:$0xff]
    %v385 = vld [vmem:[#allocation7 + $0x38] sm:$0xff]
    %v387 = vsel %vm183, %v263, 0
    %v390 = vsel %vm183, %v268, 0
    %v393 = vsel %vm183, %v273, 0
    %v396 = vsel %vm183, %v278, 0
    %398 = vmatprep.subr.mxu0 0.0
    %399 = vmatpush1.msra.mxu0 %v378
    %400 = vmatprep.subr.mxu0 0.0
    %401 = vmatpush1.msra.mxu0 %v379
    %402 = vmatprep.subr.mxu0 0.0
    %403 = vmatpush1.msra.mxu0 %v380
    %404 = vmatprep.subr.mxu0 0.0
    %405 = vmatpush1.msra.mxu0 %v381
    %406 = vmatprep.subr.mxu0 0.0
    %407 = vmatpush1.msra.mxu0 0.0
    %408 = vmatprep.subr.mxu0 0.0
    %409 = vmatpush1.msra.mxu0 0.0
    %410 = vmatprep.subr.mxu0 0.0
    %411 = vmatpush1.msra.mxu0 0.0
    %412 = vmatprep.subr.mxu0 0.0
    %413 = vmatpush1.msra.mxu0 0.0
    %414 = vmatprep.subr.mxu0 0.0
    %415 = vmatpush1.msra.mxu0 0.0
    %416 = vmatprep.subr.mxu0 0.0
    %417 = vmatpush1.msra.mxu0 0.0
    %418 = vmatprep.subr.mxu0 0.0
    %419 = vmatpush1.msra.mxu0 0.0
    %420 = vmatprep.subr.mxu0 0.0
    %421 = vmatpush1.msra.mxu0 0.0
    %422 = vmatprep.subr.mxu0 0.0
    %423 = vmatpush1.msra.mxu0 0.0
    %424 = vmatprep.subr.mxu0 0.0
    %425 = vmatpush1.msra.mxu0 0.0
    %426 = vmatprep.subr.mxu0 0.0
    %427 = vmatpush1.msra.mxu0 0.0
    %428 = vmatprep.subr.mxu0 0.0
    %429 = vmatpush1.msra.mxu0 0.0
    %430 = vmatprep.subr.mxu0 0.0
    %431 = vmatpush1.msra.mxu0 0.0
    %432 = vmatprep.subr.mxu0 0.0
    %433 = vmatpush1.msra.mxu0 0.0
    %434 = vmatprep.subr.mxu0 0.0
    %435 = vmatpush1.msra.mxu0 0.0
    %436 = vmatprep.subr.mxu0 0.0
    %437 = vmatpush1.msra.mxu0 0.0
    %438 = vmatprep.subr.mxu0 0.0
    %439 = vmatpush1.msra.mxu0 0.0
    %440 = vmatprep.subr.mxu0 0.0
    %441 = vmatpush1.msra.mxu0 0.0
    %442 = vmatprep.subr.mxu0 0.0
    %443 = vmatpush1.msra.mxu0 0.0
    %444 = vmatprep.subr.mxu0 0.0
    %445 = vmatpush1.msra.mxu0 0.0
    %446 = vmatprep.subr.mxu0 0.0
    %447 = vmatpush1.msra.mxu0 0.0
    %448 = vmatprep.subr.mxu0 0.0
    %449 = vmatpush1.msra.mxu0 0.0
    %450 = vmatprep.subr.mxu0 0.0
    %451 = vmatpush1.msra.mxu0 0.0
    %452 = vmatprep.subr.mxu0 0.0
    %453 = vmatpush1.msra.mxu0 0.0
    %454 = vmatprep.subr.mxu0 0.0
    %455 = vmatpush1.msra.mxu0 0.0
    %456 = vmatprep.subr.mxu0 0.0
    %457 = vmatpush1.msra.mxu0 0.0
    %458 = vmatprep.subr.mxu0 0.0
    %459 = vmatpush1.msra.mxu0 0.0
    %460 = vmatprep.subr.mxu0 0.0
    %461 = vmatpush1.msra.mxu0 0.0
    %462 = vmatprep.mubr.f32.mxu0 0.0
    %463 = vmatmul.mubr.f32.gmra.mrb[0].mxu0 %v387
    %v464 = vpop.f32.mrb[0].mxu0
    %v465 = vadd.f32 0.0, %v464
    %v466 = vpop.f32.mrb[0].mxu0
    %467 = vmatprep.mubr.f32.mxu0 0.0
    %468 = vmatmul.mubr.f32.gmra.mrb[0].mxu0 %v390
    %v469 = vpop.f32.mrb[0].mxu0
    %v470 = vadd.f32 0.0, %v469
    %v471 = vpop.f32.mrb[0].mxu0
    %472 = vmatprep.mubr.f32.mxu0 0.0
    %473 = vmatmul.mubr.f32.gmra.mrb[0].mxu0 %v393
    %v474 = vpop.f32.mrb[0].mxu0
    %v475 = vadd.f32 0.0, %v474
    %v476 = vpop.f32.mrb[0].mxu0
    %477 = vmatprep.mubr.f32.mxu0 0.0
    %478 = vmatmul.mubr.f32.gmra.mrb[0].mxu0 %v396
    %v479 = vpop.f32.mrb[0].mxu0
    %v480 = vadd.f32 0.0, %v479
    %v481 = vpop.f32.mrb[0].mxu0
    %482 = vdwg.mxu0
    %v484 = vsel %vm183, %v360, 0
    %v487 = vsel %vm183, %v365, 0
    %v490 = vsel %vm183, %v370, 0
    %v493 = vsel %vm183, %v375, 0
    %495 = vmatprep.subr.mxu0 0.0
    %496 = vmatpush1.msra.mxu0 %v382
    %497 = vmatprep.subr.mxu0 0.0
    %498 = vmatpush1.msra.mxu0 %v383
    %499 = vmatprep.subr.mxu0 0.0
    %500 = vmatpush1.msra.mxu0 %v384
    %501 = vmatprep.subr.mxu0 0.0
    %502 = vmatpush1.msra.mxu0 %v385
    %503 = vmatprep.subr.mxu0 0.0
    %504 = vmatpush1.msra.mxu0 0.0
    %505 = vmatprep.subr.mxu0 0.0
    %506 = vmatpush1.msra.mxu0 0.0
    %507 = vmatprep.subr.mxu0 0.0
    %508 = vmatpush1.msra.mxu0 0.0
    %509 = vmatprep.subr.mxu0 0.0
    %510 = vmatpush1.msra.mxu0 0.0
    %511 = vmatprep.subr.mxu0 0.0
    %512 = vmatpush1.msra.mxu0 0.0
    %513 = vmatprep.subr.mxu0 0.0
    %514 = vmatpush1.msra.mxu0 0.0
    %515 = vmatprep.subr.mxu0 0.0
    %516 = vmatpush1.msra.mxu0 0.0
    %517 = vmatprep.subr.mxu0 0.0
    %518 = vmatpush1.msra.mxu0 0.0
    %519 = vmatprep.subr.mxu0 0.0
    %520 = vmatpush1.msra.mxu0 0.0
    %521 = vmatprep.subr.mxu0 0.0
    %522 = vmatpush1.msra.mxu0 0.0
    %523 = vmatprep.subr.mxu0 0.0
    %524 = vmatpush1.msra.mxu0 0.0
    %525 = vmatprep.subr.mxu0 0.0
    %526 = vmatpush1.msra.mxu0 0.0
    %527 = vmatprep.subr.mxu0 0.0
    %528 = vmatpush1.msra.mxu0 0.0
    %529 = vmatprep.subr.mxu0 0.0
    %530 = vmatpush1.msra.mxu0 0.0
    %531 = vmatprep.subr.mxu0 0.0
    %532 = vmatpush1.msra.mxu0 0.0
    %533 = vmatprep.subr.mxu0 0.0
    %534 = vmatpush1.msra.mxu0 0.0
    %535 = vmatprep.subr.mxu0 0.0
    %536 = vmatpush1.msra.mxu0 0.0
    %537 = vmatprep.subr.mxu0 0.0
    %538 = vmatpush1.msra.mxu0 0.0
    %539 = vmatprep.subr.mxu0 0.0
    %540 = vmatpush1.msra.mxu0 0.0
    %541 = vmatprep.subr.mxu0 0.0
    %542 = vmatpush1.msra.mxu0 0.0
    %543 = vmatprep.subr.mxu0 0.0
    %544 = vmatpush1.msra.mxu0 0.0
    %545 = vmatprep.subr.mxu0 0.0
    %546 = vmatpush1.msra.mxu0 0.0
    %547 = vmatprep.subr.mxu0 0.0
    %548 = vmatpush1.msra.mxu0 0.0
    %549 = vmatprep.subr.mxu0 0.0
    %550 = vmatpush1.msra.mxu0 0.0
    %551 = vmatprep.subr.mxu0 0.0
    %552 = vmatpush1.msra.mxu0 0.0
    %553 = vmatprep.subr.mxu0 0.0
    %554 = vmatpush1.msra.mxu0 0.0
    %555 = vmatprep.subr.mxu0 0.0
    %556 = vmatpush1.msra.mxu0 0.0
    %557 = vmatprep.subr.mxu0 0.0
    %558 = vmatpush1.msra.mxu0 0.0
    %559 = vmatprep.mubr.f32.mxu0 0.0
    %560 = vmatmul.mubr.f32.gmra.mrb[0].mxu0 %v484
    %v561 = vpop.f32.mrb[0].mxu0
    %v562 = vadd.f32 0.0, %v561
    %v563 = vpop.f32.mrb[0].mxu0
    %564 = vmatprep.mubr.f32.mxu0 0.0
    %565 = vmatmul.mubr.f32.gmra.mrb[0].mxu0 %v487
    %v566 = vpop.f32.mrb[0].mxu0
    %v567 = vadd.f32 0.0, %v566
    %v568 = vpop.f32.mrb[0].mxu0
    %569 = vmatprep.mubr.f32.mxu0 0.0
    %570 = vmatmul.mubr.f32.gmra.mrb[0].mxu0 %v490
    %v571 = vpop.f32.mrb[0].mxu0
    %v572 = vadd.f32 0.0, %v571
    %v573 = vpop.f32.mrb[0].mxu0
    %574 = vmatprep.mubr.f32.mxu0 0.0
    %575 = vmatmul.mubr.f32.gmra.mrb[0].mxu0 %v493
    %v576 = vpop.f32.mrb[0].mxu0
    %v577 = vadd.f32 0.0, %v576
    %v578 = vpop.f32.mrb[0].mxu0
    %579 = vdwg.mxu0
    %580 = vst.msk [vmem:[#allocation8] sm:$0xff] %vm183, %v465
    %581 = vst.msk [vmem:[#allocation8 + $0x8] sm:$0xff] %vm183, %v470
    %582 = vst.msk [vmem:[#allocation8 + $0x10] sm:$0xff] %vm183, %v475
    %583 = vst.msk [vmem:[#allocation8 + $0x18] sm:$0xff] %vm183, %v480
    %584 = vst.msk [vmem:[#allocation8 + $0x20] sm:$0xff] %vm183, %v562
    %585 = vst.msk [vmem:[#allocation8 + $0x28] sm:$0xff] %vm183, %v567
    %586 = vst.msk [vmem:[#allocation8 + $0x30] sm:$0xff] %vm183, %v572
    %587 = vst.msk [vmem:[#allocation8 + $0x38] sm:$0xff] %vm183, %v577
    // Predicated region
    $region38: #{tpu_custom_call.1} parent=1 // pred_check
      _
    $region39: #{tpu_custom_call.1} parent=1 // pred_check_branch
      %589 = sbr.rel (0) target = $region41
    $region40: #{tpu_custom_call.1} parent=1 // pred_region
      %s591 = ssub.s32 1024, 1024
      %592 = vsyncadd [#allocation4], %s591
      %s593 = sshll.u32 [#allocation8], 4
      %s594 = int_to_ptr.vmem [resolvable:$true] %s593
      %599 = dma.vmem_to_hbm [thread:$0]  %s594, 1024, %s6, [#allocation4], 128, 128, 8
    $region41: #{tpu_custom_call.1} parent=1 // pred_fallthru
      _
    // Predicated region
    $region42: #{tpu_custom_call.1} parent=1 // pred_check
      _
    $region43: #{tpu_custom_call.1} parent=1 // pred_check_branch
      %601 = sbr.rel (0) target = $region45
    $region44: #{tpu_custom_call.1} parent=1 // pred_region
      %602 = dma.done [#allocation4], 1024
    $region45: #{tpu_custom_call.1} parent=1 // pred_fallthru
      _
    %603 = vsyncpa [#allocation3], 1
    %604 = vsyncpa [#allocation6], 1
    %605 = vsyncpa [#allocation4], 1

</llo_original>
